<compile_context>
chip_gen: v7x
topology: tpu7x:2x2x1
jax: 0.10.0
libtpu: 0.0.40
codegen_flags: <defaults>
</compile_context>

<pallas_src>
import jax
import jax.numpy as jnp
from jax.experimental import pallas as pl
from jax.experimental.pallas import tpu as pltpu


# ---------------------------------------------------------------------------
# Hardware-aware tile budget
# ---------------------------------------------------------------------------
def _query_vmem_capacity_bytes():
    try:
        return int(pltpu.get_tpu_info().vmem_capacity_bytes)
    except Exception:
        return 64 * 1024 * 1024  # conservative (v7x-sized) fallback


_VMEM_CAPACITY = _query_vmem_capacity_bytes()
_TILE_BUDGET = _VMEM_CAPACITY // 8                       # per-kernel working set target
_VMEM_LIMIT = min(_VMEM_CAPACITY // 2, 64 * 1024 * 1024)  # scoped VMEM limit we request


def _pick_spatial_tile(hw, c, a_total, itemsize):
    """Largest spatial (lane) tile whose double-buffered in+out fits the budget."""
    per_col = (c + a_total) * itemsize * 2  # x2: double-buffered pipeline
    t = _TILE_BUDGET // max(per_col, 1)
    t = max(128, (t // 128) * 128)          # lane-aligned
    if t >= hw:
        return hw                           # whole level in one tile (full-dim block ok)
    return t


# ---------------------------------------------------------------------------
# Kernel: fused cls_logits + bbox_pred 1x1 convs on one spatial tile
# ---------------------------------------------------------------------------
def _rpn_head_kernel(x_ref, wc_ref, bc_ref, wb_ref, bb_ref, cls_ref, bbox_ref):
    # x_ref:   (1, C, T)   activation tile, channels on sublanes, pixels on lanes
    # wc_ref:  (A, C)      cls_logits weight (1x1 conv == channel matmul)
    # bc_ref:  (A, 1)      cls_logits bias
    # wb_ref:  (4A, C)     bbox_pred weight
    # bb_ref:  (4A, 1)     bbox_pred bias
    # cls_ref: (1, A, T)   logits output tile
    # bbox_ref:(1, 4A, T)  bbox output tile
    x = x_ref[0]  # (C, T) -- loaded once, shared by both heads

    cls = jnp.dot(wc_ref[...], x, preferred_element_type=jnp.float32) + bc_ref[...]
    box = jnp.dot(wb_ref[...], x, preferred_element_type=jnp.float32) + bb_ref[...]

    cls_ref[...] = cls[None].astype(cls_ref.dtype)
    bbox_ref[...] = box[None].astype(bbox_ref.dtype)


def rpn_head_conv_regressor(x_nchw, w_cls, b_cls, w_bbox, b_bbox):
    """Apply both 1x1-conv heads to one NCHW feature map. Returns (logits, bbox)."""
    n, c, h, w = x_nchw.shape
    hw = h * w
    a_cls = w_cls.shape[0]
    a_box = w_bbox.shape[0]
    itemsize = jnp.dtype(x_nchw.dtype).itemsize

    x2 = x_nchw.reshape(n, c, hw)           # contiguous NCHW -> bitcast, no HBM traffic
    t = _pick_spatial_tile(hw, c, a_cls + a_box, itemsize)
    grid = (n, pl.cdiv(hw, t))

    cls3, box3 = pl.pallas_call(
        _rpn_head_kernel,
        out_shape=(
            jax.ShapeDtypeStruct((n, a_cls, hw), x_nchw.dtype),
            jax.ShapeDtypeStruct((n, a_box, hw), x_nchw.dtype),
        ),
        grid_spec=pltpu.PrefetchScalarGridSpec(
            num_scalar_prefetch=0,
            grid=grid,
            in_specs=[
                pl.BlockSpec((1, c, t), lambda i, j: (i, 0, j)),
                pl.BlockSpec((a_cls, c), lambda i, j: (0, 0)),
                pl.BlockSpec((a_cls, 1), lambda i, j: (0, 0)),
                pl.BlockSpec((a_box, c), lambda i, j: (0, 0)),
                pl.BlockSpec((a_box, 1), lambda i, j: (0, 0)),
            ],
            out_specs=(
                pl.BlockSpec((1, a_cls, t), lambda i, j: (i, 0, j)),
                pl.BlockSpec((1, a_box, t), lambda i, j: (i, 0, j)),
            ),
        ),
        compiler_params=pltpu.CompilerParams(
            dimension_semantics=("parallel", "parallel"),
            vmem_limit_bytes=_VMEM_LIMIT,
        ),
    )(x2, w_cls, b_cls.reshape(a_cls, 1), w_bbox, b_bbox.reshape(a_box, 1))

    return cls3.reshape(n, a_cls, h, w), box3.reshape(n, a_box, h, w)


# ---------------------------------------------------------------------------
# Module wrapper (all FPN levels under one jit)
# ---------------------------------------------------------------------------
@jax.jit
def _forward_all_levels(xs, w_cls, b_cls, w_bbox, b_bbox):
    outs = [rpn_head_conv_regressor(x, w_cls, b_cls, w_bbox, b_bbox) for x in xs]
    logits = tuple(o[0] for o in outs)
    bbox = tuple(o[1] for o in outs)
    return logits, bbox


class RPNHeadConvRegressorPallas:
    """JAX/Pallas equivalent of maskrcnn_benchmark's RPNHeadConvRegressor."""

    def __init__(self, in_channels, num_anchors, key):
        k1, k2 = jax.random.split(key)
        # PyTorch Conv2d weight layout is (O, I, 1, 1) for a 1x1 conv -> stored as (O, I).
        # init: normal(std=0.01), bias = 0 (matches the PyTorch module).
        self.w_cls = 0.01 * jax.random.normal(
            k1, (num_anchors, in_channels), dtype=jnp.float32)
        self.b_cls = jnp.zeros((num_anchors,), dtype=jnp.float32)
        self.w_bbox = 0.01 * jax.random.normal(
            k2, (4 * num_anchors, in_channels), dtype=jnp.float32)
        self.b_bbox = jnp.zeros((4 * num_anchors,), dtype=jnp.float32)
        # NOTE: for real RPN configs in_channels is 256 (multiple of 8 sublanes) and
        # spatial tiles are multiples of 128 lanes, which keeps loads/stores dense.

    def __call__(self, xs):
        assert isinstance(xs, (list, tuple))
        logits, bbox = _forward_all_levels(
            tuple(xs), self.w_cls, self.b_cls, self.w_bbox, self.b_bbox)
        return list(logits), list(bbox)


# ---------------------------------------------------------------------------
# Pure-JAX reference + self-check
# ---------------------------------------------------------------------------
def _reference_1x1(x_nchw, w_oc, bias):
    y = jnp.einsum("nchw,oc->nohw", x_nchw, w_oc)
    return y + bias.reshape(1, -1, 1, 1)


if __name__ == "__main__":
    key = jax.random.PRNGKey(0)
    k_params, k_x0, k_x1 = jax.random.split(key, 3)

    N, C, H, W = 2, 4, 16, 16
    NUM_ANCHORS = 3

    module = RPNHeadConvRegressorPallas(C, NUM_ANCHORS, k_params)

    # Forward takes a list of feature maps (NCHW), like an FPN output.
    x0 = jax.random.normal(k_x0, (N, C, H, W), dtype=jnp.float32)
    x1 = jax.random.normal(k_x1, (N, C, H // 2, W // 2), dtype=jnp.float32)
    xs = [x0, x1]

    logits, bbox_reg = module(xs)
    logits = [jax.block_until_ready(o) for o in logits]
    bbox_reg = [jax.block_until_ready(o) for o in bbox_reg]

    for x, lg, bb in zip(xs, logits, bbox_reg):
        n_, _, h_, w_ = x.shape
        assert lg.shape == (n_, NUM_ANCHORS, h_, w_)
        assert bb.shape == (n_, 4 * NUM_ANCHORS, h_, w_)
        ref_lg = _reference_1x1(x, module.w_cls, module.b_cls)
        ref_bb = _reference_1x1(x, module.w_bbox, module.b_bbox)
        assert jnp.allclose(lg, ref_lg, atol=1e-5, rtol=1e-5)
        assert jnp.allclose(bb, ref_bb, atol=1e-5, rtol=1e-5)

    print("KERNEL_OK")
</pallas_src>

<mosaic_0001>
module attributes {stable_mosaic.version = 11 : i64} {
  func.func @_rpn_head_kernel(%arg0: i32, %arg1: i32, %arg2: memref<1x4x256xf32, #tpu.memory_space<vmem>>, %arg3: memref<3x4xf32, #tpu.memory_space<vmem>>, %arg4: memref<3x1xf32, #tpu.memory_space<vmem>>, %arg5: memref<12x4xf32, #tpu.memory_space<vmem>>, %arg6: memref<12x1xf32, #tpu.memory_space<vmem>>, %arg7: memref<1x3x256xf32, #tpu.memory_space<vmem>>, %arg8: memref<1x12x256xf32, #tpu.memory_space<vmem>>) attributes {dimension_semantics = [#tpu.dimension_semantics<parallel>, #tpu.dimension_semantics<parallel>], iteration_bounds = array<i64: 2, 1>, scalar_prefetch = 0 : i64, scratch_operands = 0 : i64, tpu.core_type = #tpu.core_type<tc>, window_params = [{transform_indices = @transform_0, window_bounds = array<i64: 1, 4, 256>}, {pipeline_mode = #tpu.pipeline_mode<synchronous>, transform_indices = @transform_1, window_bounds = array<i64: 3, 4>}, {pipeline_mode = #tpu.pipeline_mode<synchronous>, transform_indices = @transform_2, window_bounds = array<i64: 3, 1>}, {pipeline_mode = #tpu.pipeline_mode<synchronous>, transform_indices = @transform_3, window_bounds = array<i64: 12, 4>}, {pipeline_mode = #tpu.pipeline_mode<synchronous>, transform_indices = @transform_4, window_bounds = array<i64: 12, 1>}, {transform_indices = @transform_5, window_bounds = array<i64: 1, 3, 256>}, {transform_indices = @transform_6, window_bounds = array<i64: 1, 12, 256>}]} {
    %c0 = arith.constant 0 : index
    %c0_0 = arith.constant 0 : index
    %c0_1 = arith.constant 0 : index
    %0 = vector.load %arg2[%c0, %c0_0, %c0_1] : memref<1x4x256xf32, #tpu.memory_space<vmem>>, vector<1x4x256xf32>
    %1 = vector.shape_cast %0 : vector<1x4x256xf32> to vector<4x256xf32>
    %c0_2 = arith.constant 0 : index
    %c0_3 = arith.constant 0 : index
    %2 = vector.load %arg3[%c0_2, %c0_3] : memref<3x4xf32, #tpu.memory_space<vmem>>, vector<3x4xf32>
    %cst = arith.constant dense<0.000000e+00> : vector<3x256xf32>
    %3 = tpu.matmul %2, %1, %cst {dimension_numbers = #tpu.dot_dimension_numbers<[1], [0], [0], [1], [0, 0, 1, 1], [], []>} : vector<3x4xf32>, vector<4x256xf32>, vector<3x256xf32> -> vector<3x256xf32>
    %c0_4 = arith.constant 0 : index
    %c0_5 = arith.constant 0 : index
    %4 = vector.load %arg4[%c0_4, %c0_5] : memref<3x1xf32, #tpu.memory_space<vmem>>, vector<3x1xf32>
    %5 = vector.broadcast %4 : vector<3x1xf32> to vector<3x256xf32>
    %6 = arith.addf %3, %5 : vector<3x256xf32>
    %c0_6 = arith.constant 0 : index
    %c0_7 = arith.constant 0 : index
    %7 = vector.load %arg5[%c0_6, %c0_7] : memref<12x4xf32, #tpu.memory_space<vmem>>, vector<12x4xf32>
    %cst_8 = arith.constant dense<0.000000e+00> : vector<12x256xf32>
    %8 = tpu.matmul %7, %1, %cst_8 {dimension_numbers = #tpu.dot_dimension_numbers<[1], [0], [0], [1], [0, 0, 1, 1], [], []>} : vector<12x4xf32>, vector<4x256xf32>, vector<12x256xf32> -> vector<12x256xf32>
    %c0_9 = arith.constant 0 : index
    %c0_10 = arith.constant 0 : index
    %9 = vector.load %arg6[%c0_9, %c0_10] : memref<12x1xf32, #tpu.memory_space<vmem>>, vector<12x1xf32>
    %10 = vector.broadcast %9 : vector<12x1xf32> to vector<12x256xf32>
    %11 = arith.addf %8, %10 : vector<12x256xf32>
    %12 = vector.shape_cast %6 : vector<3x256xf32> to vector<1x3x256xf32>
    %c0_11 = arith.constant 0 : index
    %c0_12 = arith.constant 0 : index
    %c0_13 = arith.constant 0 : index
    %13 = vector.load %arg7[%c0_11, %c0_12, %c0_13] : memref<1x3x256xf32, #tpu.memory_space<vmem>>, vector<1x3x256xf32>
    tpu.vector_store %arg7[%c0_11, %c0_12, %c0_13], %12 {strides = array<i32>} : memref<1x3x256xf32, #tpu.memory_space<vmem>>, vector<1x3x256xf32>,
    %14 = vector.shape_cast %11 : vector<12x256xf32> to vector<1x12x256xf32>
    %c0_14 = arith.constant 0 : index
    %c0_15 = arith.constant 0 : index
    %c0_16 = arith.constant 0 : index
    %15 = vector.load %arg8[%c0_14, %c0_15, %c0_16] : memref<1x12x256xf32, #tpu.memory_space<vmem>>, vector<1x12x256xf32>
    tpu.vector_store %arg8[%c0_14, %c0_15, %c0_16], %14 {strides = array<i32>} : memref<1x12x256xf32, #tpu.memory_space<vmem>>, vector<1x12x256xf32>,
    return
  }
  func.func @transform_0(%arg0: i32, %arg1: i32) -> (i32, i32, i32) {
    %c0_i32 = arith.constant 0 : i32
    %c0_i32_0 = arith.constant 0 : i32
    return %arg0, %c0_i32, %arg1 : i32, i32, i32
  }
  func.func @transform_1(%arg0: i32, %arg1: i32) -> (i32, i32) {
    %c0_i32 = arith.constant 0 : i32
    %c0_i32_0 = arith.constant 0 : i32
    %c0_i32_1 = arith.constant 0 : i32
    return %c0_i32, %c0_i32_0 : i32, i32
  }
  func.func @transform_2(%arg0: i32, %arg1: i32) -> (i32, i32) {
    %c0_i32 = arith.constant 0 : i32
    %c0_i32_0 = arith.constant 0 : i32
    %c0_i32_1 = arith.constant 0 : i32
    return %c0_i32, %c0_i32_0 : i32, i32
  }
  func.func @transform_3(%arg0: i32, %arg1: i32) -> (i32, i32) {
    %c0_i32 = arith.constant 0 : i32
    %c0_i32_0 = arith.constant 0 : i32
    %c0_i32_1 = arith.constant 0 : i32
    return %c0_i32, %c0_i32_0 : i32, i32
  }
  func.func @transform_4(%arg0: i32, %arg1: i32) -> (i32, i32) {
    %c0_i32 = arith.constant 0 : i32
    %c0_i32_0 = arith.constant 0 : i32
    %c0_i32_1 = arith.constant 0 : i32
    return %c0_i32, %c0_i32_0 : i32, i32
  }
  func.func @transform_5(%arg0: i32, %arg1: i32) -> (i32, i32, i32) {
    %c0_i32 = arith.constant 0 : i32
    %c0_i32_0 = arith.constant 0 : i32
    return %arg0, %c0_i32, %arg1 : i32, i32, i32
  }
  func.func @transform_6(%arg0: i32, %arg1: i32) -> (i32, i32, i32) {
    %c0_i32 = arith.constant 0 : i32
    %c0_i32_0 = arith.constant 0 : i32
    return %arg0, %c0_i32, %arg1 : i32, i32, i32
  }
}

module attributes {stable_mosaic.version = 11 : i64} {
  func.func @_rpn_head_kernel(%arg0: i32, %arg1: i32, %arg2: memref<1x4x64xf32, #tpu.memory_space<vmem>>, %arg3: memref<3x4xf32, #tpu.memory_space<vmem>>, %arg4: memref<3x1xf32, #tpu.memory_space<vmem>>, %arg5: memref<12x4xf32, #tpu.memory_space<vmem>>, %arg6: memref<12x1xf32, #tpu.memory_space<vmem>>, %arg7: memref<1x3x64xf32, #tpu.memory_space<vmem>>, %arg8: memref<1x12x64xf32, #tpu.memory_space<vmem>>) attributes {dimension_semantics = [#tpu.dimension_semantics<parallel>, #tpu.dimension_semantics<parallel>], iteration_bounds = array<i64: 2, 1>, scalar_prefetch = 0 : i64, scratch_operands = 0 : i64, tpu.core_type = #tpu.core_type<tc>, window_params = [{transform_indices = @transform_0, window_bounds = array<i64: 1, 4, 64>}, {pipeline_mode = #tpu.pipeline_mode<synchronous>, transform_indices = @transform_1, window_bounds = array<i64: 3, 4>}, {pipeline_mode = #tpu.pipeline_mode<synchronous>, transform_indices = @transform_2, window_bounds = array<i64: 3, 1>}, {pipeline_mode = #tpu.pipeline_mode<synchronous>, transform_indices = @transform_3, window_bounds = array<i64: 12, 4>}, {pipeline_mode = #tpu.pipeline_mode<synchronous>, transform_indices = @transform_4, window_bounds = array<i64: 12, 1>}, {transform_indices = @transform_5, window_bounds = array<i64: 1, 3, 64>}, {transform_indices = @transform_6, window_bounds = array<i64: 1, 12, 64>}]} {
    %c0 = arith.constant 0 : index
    %c0_0 = arith.constant 0 : index
    %c0_1 = arith.constant 0 : index
    %0 = vector.load %arg2[%c0, %c0_0, %c0_1] : memref<1x4x64xf32, #tpu.memory_space<vmem>>, vector<1x4x64xf32>
    %1 = vector.shape_cast %0 : vector<1x4x64xf32> to vector<4x64xf32>
    %c0_2 = arith.constant 0 : index
    %c0_3 = arith.constant 0 : index
    %2 = vector.load %arg3[%c0_2, %c0_3] : memref<3x4xf32, #tpu.memory_space<vmem>>, vector<3x4xf32>
    %cst = arith.constant dense<0.000000e+00> : vector<3x64xf32>
    %3 = tpu.matmul %2, %1, %cst {dimension_numbers = #tpu.dot_dimension_numbers<[1], [0], [0], [1], [0, 0, 1, 1], [], []>} : vector<3x4xf32>, vector<4x64xf32>, vector<3x64xf32> -> vector<3x64xf32>
    %c0_4 = arith.constant 0 : index
    %c0_5 = arith.constant 0 : index
    %4 = vector.load %arg4[%c0_4, %c0_5] : memref<3x1xf32, #tpu.memory_space<vmem>>, vector<3x1xf32>
    %5 = vector.broadcast %4 : vector<3x1xf32> to vector<3x64xf32>
    %6 = arith.addf %3, %5 : vector<3x64xf32>
    %c0_6 = arith.constant 0 : index
    %c0_7 = arith.constant 0 : index
    %7 = vector.load %arg5[%c0_6, %c0_7] : memref<12x4xf32, #tpu.memory_space<vmem>>, vector<12x4xf32>
    %cst_8 = arith.constant dense<0.000000e+00> : vector<12x64xf32>
    %8 = tpu.matmul %7, %1, %cst_8 {dimension_numbers = #tpu.dot_dimension_numbers<[1], [0], [0], [1], [0, 0, 1, 1], [], []>} : vector<12x4xf32>, vector<4x64xf32>, vector<12x64xf32> -> vector<12x64xf32>
    %c0_9 = arith.constant 0 : index
    %c0_10 = arith.constant 0 : index
    %9 = vector.load %arg6[%c0_9, %c0_10] : memref<12x1xf32, #tpu.memory_space<vmem>>, vector<12x1xf32>
    %10 = vector.broadcast %9 : vector<12x1xf32> to vector<12x64xf32>
    %11 = arith.addf %8, %10 : vector<12x64xf32>
    %12 = vector.shape_cast %6 : vector<3x64xf32> to vector<1x3x64xf32>
    %c0_11 = arith.constant 0 : index
    %c0_12 = arith.constant 0 : index
    %c0_13 = arith.constant 0 : index
    %13 = vector.load %arg7[%c0_11, %c0_12, %c0_13] : memref<1x3x64xf32, #tpu.memory_space<vmem>>, vector<1x3x64xf32>
    tpu.vector_store %arg7[%c0_11, %c0_12, %c0_13], %12 {strides = array<i32>} : memref<1x3x64xf32, #tpu.memory_space<vmem>>, vector<1x3x64xf32>,
    %14 = vector.shape_cast %11 : vector<12x64xf32> to vector<1x12x64xf32>
    %c0_14 = arith.constant 0 : index
    %c0_15 = arith.constant 0 : index
    %c0_16 = arith.constant 0 : index
    %15 = vector.load %arg8[%c0_14, %c0_15, %c0_16] : memref<1x12x64xf32, #tpu.memory_space<vmem>>, vector<1x12x64xf32>
    tpu.vector_store %arg8[%c0_14, %c0_15, %c0_16], %14 {strides = array<i32>} : memref<1x12x64xf32, #tpu.memory_space<vmem>>, vector<1x12x64xf32>,
    return
  }
  func.func @transform_0(%arg0: i32, %arg1: i32) -> (i32, i32, i32) {
    %c0_i32 = arith.constant 0 : i32
    %c0_i32_0 = arith.constant 0 : i32
    return %arg0, %c0_i32, %arg1 : i32, i32, i32
  }
  func.func @transform_1(%arg0: i32, %arg1: i32) -> (i32, i32) {
    %c0_i32 = arith.constant 0 : i32
    %c0_i32_0 = arith.constant 0 : i32
    %c0_i32_1 = arith.constant 0 : i32
    return %c0_i32, %c0_i32_0 : i32, i32
  }
  func.func @transform_2(%arg0: i32, %arg1: i32) -> (i32, i32) {
    %c0_i32 = arith.constant 0 : i32
    %c0_i32_0 = arith.constant 0 : i32
    %c0_i32_1 = arith.constant 0 : i32
    return %c0_i32, %c0_i32_0 : i32, i32
  }
  func.func @transform_3(%arg0: i32, %arg1: i32) -> (i32, i32) {
    %c0_i32 = arith.constant 0 : i32
    %c0_i32_0 = arith.constant 0 : i32
    %c0_i32_1 = arith.constant 0 : i32
    return %c0_i32, %c0_i32_0 : i32, i32
  }
  func.func @transform_4(%arg0: i32, %arg1: i32) -> (i32, i32) {
    %c0_i32 = arith.constant 0 : i32
    %c0_i32_0 = arith.constant 0 : i32
    %c0_i32_1 = arith.constant 0 : i32
    return %c0_i32, %c0_i32_0 : i32, i32
  }
  func.func @transform_5(%arg0: i32, %arg1: i32) -> (i32, i32, i32) {
    %c0_i32 = arith.constant 0 : i32
    %c0_i32_0 = arith.constant 0 : i32
    return %arg0, %c0_i32, %arg1 : i32, i32, i32
  }
  func.func @transform_6(%arg0: i32, %arg1: i32) -> (i32, i32, i32) {
    %c0_i32 = arith.constant 0 : i32
    %c0_i32_0 = arith.constant 0 : i32
    return %arg0, %c0_i32, %arg1 : i32, i32, i32
  }
}

</mosaic_0001>

<llo_original>
// kernel: _forward_all_levels.2
$region0: #{_forward_all_levels.2}
  #allocation0 [shape = 'u32[]', space=smem, size = 0x4, offset = 0x4, fixed_abs, tag = 'smem constant byte address 0x4 - core index']
  #allocation1 [shape = 'u32[144,128]{1,0:T(1,128)}', space=vmem, size = 0x12000, scoped, tag = 'internal scratch']
  %s0 = inlined_call_operand.vmem [shape: f32[2,4,256], index: 0, kind: input, shape index: {}]
  %s1 = inlined_call_operand.vmem [shape: f32[3,4], index: 1, kind: input, shape index: {}]
  %s2 = inlined_call_operand.vmem [shape: f32[3,1], index: 2, kind: input, shape index: {}]
  %s3 = inlined_call_operand.vmem [shape: f32[12,4], index: 3, kind: input, shape index: {}]
  %s4 = inlined_call_operand.vmem [shape: f32[12,1], index: 4, kind: input, shape index: {}]
  %s5 = inlined_call_operand.vmem [shape: f32[2,3,256], index: 5, kind: output, shape index: {0}]
  %s6 = inlined_call_operand.vmem [shape: f32[2,12,256], index: 6, kind: output, shape index: {1}]
  %7 = xla_tuple %s5, %s6
  %s8 = sld [smem:[#allocation0]]
  $region61: #{_forward_all_levels.2} parent=0
    _
  %s10 = ssub.s32 1, %s8
  %s11 = scalar_select 0, %s10, %s8
  loop: start=0, step=1, limit=4
  $region2: #{_forward_all_levels.2} parent=0 // loop_pre_header
    _
  $region3: #{_forward_all_levels.2} parent=0 // loop_header
    %s13 = sphi 0, %s17
    %p14 = scmp.ge.s32.totalorder %s13, 4
    %s20 = sphi 0, %s32
    %s21 = sphi 0, %s28
    %s22 = sphi 0, %s20
    %s23 = sphi 0, %s21
    %s24 = sphi 0, %s22
    %s25 = sphi 0, %s23
    %s37 = sphi 0, %s39
    %s40 = sphi 0, %s37
    %s41 = sphi 0, %s40
    %s57 = sphi 0, %s41
    %s61 = sphi 0, %s61
    %s63 = sphi 0, %s61
    %s64 = sphi 0, %s63
    %s78 = sphi 0, %s64
    %s82 = sphi 0, %s82
    %s84 = sphi 0, %s82
    %s85 = sphi 0, %s84
    %s99 = sphi 0, %s85
    %s103 = sphi 0, %s103
    %s105 = sphi 0, %s103
    %s106 = sphi 0, %s105
    %s120 = sphi 0, %s106
    %s124 = sphi 0, %s124
    %s126 = sphi 0, %s124
    %s127 = sphi 0, %s126
    %s141 = sphi 0, %s127
    %s149 = sphi 0, %s151
    %s152 = sphi 0, %s149
    %s153 = sphi 0, %s152
    %s169 = sphi 0, %s153
    %s177 = sphi 0, %s179
    %s180 = sphi 0, %s177
    %s181 = sphi 0, %s180
    %s197 = sphi 0, %s181
  $region4: #{_forward_all_levels.2} parent=0 // loop_header_branch
    %16 = sbr.rel (%p14) target = $region8
  $region5: #{_forward_all_levels.2} parent=0 // loop_body
    %s18 = ssub.s32 %s13, 1
    %s19 = ssub.s32 %s13, 2
    %s26 = sadd.s32 1, %s21
    %p27 = scmp.ge.s32.totalorder %s26, 1
    %s28 = scalar_select %p27, 0, %s26
    %s29 = sadd.s32 1, %s20
    %s30 = scalar_select %p27, %s29, %s20
    %p31 = scmp.ge.s32.totalorder %s30, 2
    %s32 = scalar_select %p31, 0, %s30
    %s33 = ssub.s32 %s20, %s32
    %s34 = ssub.s32 %s21, %s28
    %s35 = sor.u32 %s33, %s34
    %p36 = scmp.eq.s32.totalorder %s35, 0
    %s38 = sadd.s32 %s37, 1
    %s39 = scalar_select %p36, %s37, %s38
    %p42 = pneg %p36
    %p43 = scmp.eq.s32.totalorder %s13, 1
    %p44 = por %p42, %p43
    %p45 = scmp.ne.s32.totalorder %s37, %s40
    %p46 = scmp.eq.s32.totalorder %s13, 0
    %p47 = por %p45, %p46
    %p48 = scmp.ne.s32.totalorder %s37, %s40
    %p49 = scmp.eq.s32.totalorder %s18, 1
    %p50 = por %p48, %p49
    %p51 = scmp.ne.s32.totalorder %s40, %s41
    %p52 = scmp.eq.s32.totalorder %s18, 0
    %p53 = por %p51, %p52
    %p54 = scmp.ne.s32.totalorder %s40, %s41
    %p55 = scmp.eq.s32.totalorder %s19, 1
    %p56 = por %p54, %p55
    %p58 = scmp.ne.s32.totalorder %s41, %s57
    %p59 = scmp.eq.s32.totalorder %s19, 0
    %p60 = por %p58, %p59
    %s62 = sadd.s32 %s61, 1
    %p65 = scmp.eq.s32.totalorder %s13, 1
    %p66 = scmp.ne.s32.totalorder %s61, %s63
    %p67 = scmp.eq.s32.totalorder %s13, 0
    %p68 = por %p66, %p67
    %p69 = scmp.ne.s32.totalorder %s61, %s63
    %p70 = scmp.eq.s32.totalorder %s18, 1
    %p71 = por %p69, %p70
    %p72 = scmp.ne.s32.totalorder %s63, %s64
    %p73 = scmp.eq.s32.totalorder %s18, 0
    %p74 = por %p72, %p73
    %p75 = scmp.ne.s32.totalorder %s63, %s64
    %p76 = scmp.eq.s32.totalorder %s19, 1
    %p77 = por %p75, %p76
    %p79 = scmp.ne.s32.totalorder %s64, %s78
    %p80 = scmp.eq.s32.totalorder %s19, 0
    %p81 = por %p79, %p80
    %s83 = sadd.s32 %s82, 1
    %p86 = scmp.eq.s32.totalorder %s13, 1
    %p87 = scmp.ne.s32.totalorder %s82, %s84
    %p88 = scmp.eq.s32.totalorder %s13, 0
    %p89 = por %p87, %p88
    %p90 = scmp.ne.s32.totalorder %s82, %s84
    %p91 = scmp.eq.s32.totalorder %s18, 1
    %p92 = por %p90, %p91
    %p93 = scmp.ne.s32.totalorder %s84, %s85
    %p94 = scmp.eq.s32.totalorder %s18, 0
    %p95 = por %p93, %p94
    %p96 = scmp.ne.s32.totalorder %s84, %s85
    %p97 = scmp.eq.s32.totalorder %s19, 1
    %p98 = por %p96, %p97
    %p100 = scmp.ne.s32.totalorder %s85, %s99
    %p101 = scmp.eq.s32.totalorder %s19, 0
    %p102 = por %p100, %p101
    %s104 = sadd.s32 %s103, 1
    %p107 = scmp.eq.s32.totalorder %s13, 1
    %p108 = scmp.ne.s32.totalorder %s103, %s105
    %p109 = scmp.eq.s32.totalorder %s13, 0
    %p110 = por %p108, %p109
    %p111 = scmp.ne.s32.totalorder %s103, %s105
    %p112 = scmp.eq.s32.totalorder %s18, 1
    %p113 = por %p111, %p112
    %p114 = scmp.ne.s32.totalorder %s105, %s106
    %p115 = scmp.eq.s32.totalorder %s18, 0
    %p116 = por %p114, %p115
    %p117 = scmp.ne.s32.totalorder %s105, %s106
    %p118 = scmp.eq.s32.totalorder %s19, 1
    %p119 = por %p117, %p118
    %p121 = scmp.ne.s32.totalorder %s106, %s120
    %p122 = scmp.eq.s32.totalorder %s19, 0
    %p123 = por %p121, %p122
    %s125 = sadd.s32 %s124, 1
    %p128 = scmp.eq.s32.totalorder %s13, 1
    %p129 = scmp.ne.s32.totalorder %s124, %s126
    %p130 = scmp.eq.s32.totalorder %s13, 0
    %p131 = por %p129, %p130
    %p132 = scmp.ne.s32.totalorder %s124, %s126
    %p133 = scmp.eq.s32.totalorder %s18, 1
    %p134 = por %p132, %p133
    %p135 = scmp.ne.s32.totalorder %s126, %s127
    %p136 = scmp.eq.s32.totalorder %s18, 0
    %p137 = por %p135, %p136
    %p138 = scmp.ne.s32.totalorder %s126, %s127
    %p139 = scmp.eq.s32.totalorder %s19, 1
    %p140 = por %p138, %p139
    %p142 = scmp.ne.s32.totalorder %s127, %s141
    %p143 = scmp.eq.s32.totalorder %s19, 0
    %p144 = por %p142, %p143
    %s145 = ssub.s32 %s20, %s32
    %s146 = ssub.s32 %s21, %s28
    %s147 = sor.u32 %s145, %s146
    %p148 = scmp.eq.s32.totalorder %s147, 0
    %s150 = sadd.s32 %s149, 1
    %s151 = scalar_select %p148, %s149, %s150
    %p154 = pneg %p148
    %p155 = scmp.eq.s32.totalorder %s13, 1
    %p156 = por %p154, %p155
    %p157 = scmp.ne.s32.totalorder %s149, %s152
    %p158 = scmp.eq.s32.totalorder %s13, 0
    %p159 = por %p157, %p158
    %p160 = scmp.ne.s32.totalorder %s149, %s152
    %p161 = scmp.eq.s32.totalorder %s18, 1
    %p162 = por %p160, %p161
    %p163 = scmp.ne.s32.totalorder %s152, %s153
    %p164 = scmp.eq.s32.totalorder %s18, 0
    %p165 = por %p163, %p164
    %p166 = scmp.ne.s32.totalorder %s152, %s153
    %p167 = scmp.eq.s32.totalorder %s19, 1
    %p168 = por %p166, %p167
    %p170 = scmp.ne.s32.totalorder %s153, %s169
    %p171 = scmp.eq.s32.totalorder %s19, 0
    %p172 = por %p170, %p171
    %s173 = ssub.s32 %s20, %s32
    %s174 = ssub.s32 %s21, %s28
    %s175 = sor.u32 %s173, %s174
    %p176 = scmp.eq.s32.totalorder %s175, 0
    %s178 = sadd.s32 %s177, 1
    %s179 = scalar_select %p176, %s177, %s178
    %p182 = pneg %p176
    %p183 = scmp.eq.s32.totalorder %s13, 1
    %p184 = por %p182, %p183
    %p185 = scmp.ne.s32.totalorder %s177, %s180
    %p186 = scmp.eq.s32.totalorder %s13, 0
    %p187 = por %p185, %p186
    %p188 = scmp.ne.s32.totalorder %s177, %s180
    %p189 = scmp.eq.s32.totalorder %s18, 1
    %p190 = por %p188, %p189
    %p191 = scmp.ne.s32.totalorder %s180, %s181
    %p192 = scmp.eq.s32.totalorder %s18, 0
    %p193 = por %p191, %p192
    %p194 = scmp.ne.s32.totalorder %s180, %s181
    %p195 = scmp.eq.s32.totalorder %s19, 1
    %p196 = por %p194, %p195
    %p198 = scmp.ne.s32.totalorder %s181, %s197
    %p199 = scmp.eq.s32.totalorder %s19, 0
    %p200 = por %p198, %p199
    %p201 = scmp.le.s32.totalorder 1, %s13
    %p202 = scmp.lt.s32.totalorder %s13, 3
    %p203 = pnand %p201, %p202
    %p204 = pneg %p203
    // Predicated region
    $region9: #{_forward_all_levels.2} parent=5 // pred_check
      _
    $region10: #{_forward_all_levels.2} parent=5 // pred_check_branch
      %206 = sbr.rel (%p203) target = $region12
    $region11: #{_forward_all_levels.2} parent=5 // pred_region
      %s207 = ssub.s32 %s13, 1
      // Predicated region
      $region13: #{_forward_all_levels.2} parent=11 // pred_check
        %p208 = pneg %p74
      $region14: #{_forward_all_levels.2} parent=11 // pred_check_branch
        %210 = sbr.rel (%p208) target = $region16
      $region15: #{_forward_all_levels.2} parent=11 // pred_region
        _
      $region16: #{_forward_all_levels.2} parent=11 // pred_fallthru
        _
      // Predicated region
      $region17: #{_forward_all_levels.2} parent=11 // pred_check
        %p211 = pneg %p95
      $region18: #{_forward_all_levels.2} parent=11 // pred_check_branch
        %213 = sbr.rel (%p211) target = $region20
      $region19: #{_forward_all_levels.2} parent=11 // pred_region
        _
      $region20: #{_forward_all_levels.2} parent=11 // pred_fallthru
        _
      // Predicated region
      $region21: #{_forward_all_levels.2} parent=11 // pred_check
        %p214 = pneg %p116
      $region22: #{_forward_all_levels.2} parent=11 // pred_check_branch
        %216 = sbr.rel (%p214) target = $region24
      $region23: #{_forward_all_levels.2} parent=11 // pred_region
        _
      $region24: #{_forward_all_levels.2} parent=11 // pred_fallthru
        _
      // Predicated region
      $region25: #{_forward_all_levels.2} parent=11 // pred_check
        %p217 = pneg %p137
      $region26: #{_forward_all_levels.2} parent=11 // pred_check_branch
        %219 = sbr.rel (%p217) target = $region28
      $region27: #{_forward_all_levels.2} parent=11 // pred_region
        _
      $region28: #{_forward_all_levels.2} parent=11 // pred_fallthru
        _
    $region12: #{_forward_all_levels.2} parent=5 // pred_fallthru
      _
    %p220 = scmp.lt.s32.totalorder %s13, 2
    // Predicated region
    $region29: #{_forward_all_levels.2} parent=5 // pred_check
      %p221 = pneg %p220
    $region30: #{_forward_all_levels.2} parent=5 // pred_check_branch
      %223 = sbr.rel (%p221) target = $region32
    $region31: #{_forward_all_levels.2} parent=5 // pred_region
      // Predicated region
      $region33: #{_forward_all_levels.2} parent=31 // pred_check
        %p224 = pneg %p47
      $region34: #{_forward_all_levels.2} parent=31 // pred_check_branch
        %226 = sbr.rel (%p224) target = $region36
      $region35: #{_forward_all_levels.2} parent=31 // pred_region
        %s227 = smul.u32 2, %s21
        %p228 = scmp.lt.s32.totalorder %s20, 1
        %s229 = scalar_select %p228, %s20, 1
        %p230 = scmp.lt.s32.totalorder %s227, 1
        %s231 = scalar_select %p230, %s227, 1
        %s232 = smul.addr %s229, 2
        %s233 = sadd.s32 %s231, %s232
        %s234 = smul.addr %s233, 4
        %s235 = scalar_lea.vmem %s0, %s234
        %s236 = smul.u32 2, %s21
      $region36: #{_forward_all_levels.2} parent=31 // pred_fallthru
        _
    $region32: #{_forward_all_levels.2} parent=5 // pred_fallthru
      _
    %p237 = scmp.le.s32.totalorder 1, %s13
    %p238 = scmp.lt.s32.totalorder %s13, 3
    %p239 = pnand %p237, %p238
    %p240 = pneg %p239
    // Predicated region
    $region37: #{_forward_all_levels.2} parent=5 // pred_check
      _
    $region38: #{_forward_all_levels.2} parent=5 // pred_check_branch
      %242 = sbr.rel (%p239) target = $region40
    $region39: #{_forward_all_levels.2} parent=5 // pred_region
      %s243 = ssub.s32 %s13, 1
      %s244 = smul.u32 2, %s23
      %p245 = scmp.lt.s32.totalorder %s22, 1
      %s246 = scalar_select %p245, %s22, 1
      %p247 = scmp.lt.s32.totalorder %s244, 1
      %s248 = scalar_select %p247, %s244, 1
      %s249 = smul.addr %s246, 2
      %s250 = sadd.s32 %s248, %s249
      %s251 = smul.addr %s250, 4
      %s252 = scalar_lea.vmem %s0, %s251
      %p253 = pneg %p53
      %p254 = pneg %p50
      %p255 = pneg %p74
      %p256 = pneg %p71
      %p257 = pneg %p95
      %p258 = pneg %p92
      %p259 = pneg %p116
      %p260 = pneg %p113
      %p261 = pneg %p137
      %p262 = pneg %p134
      %p263 = pneg %p165
      %p264 = pneg %p162
      %s265 = smul.u32 2, %s23
      %p266 = scmp.lt.s32.totalorder %s22, 1
      %s267 = scalar_select %p266, %s22, 1
      %p268 = scmp.lt.s32.totalorder %s265, 1
      %s269 = scalar_select %p268, %s265, 1
      %s270 = smul.addr %s267, 2
      %s271 = sadd.s32 %s269, %s270
      %s272 = smul.addr %s271, 4
      %s273 = scalar_lea.vmem %s5, %s272
      %p274 = pneg %p193
      %p275 = pneg %p190
      %s276 = smul.u32 2, %s23
      %p277 = scmp.lt.s32.totalorder %s22, 1
      %s278 = scalar_select %p277, %s22, 1
      %p279 = scmp.lt.s32.totalorder %s276, 1
      %s280 = scalar_select %p279, %s276, 1
      %s281 = smul.addr %s278, 4
      %s282 = sadd.s32 %s280, %s281
      %s283 = smul.addr %s282, 8
      %s284 = scalar_lea.vmem %s6, %s283
      %s285 = smul.u32 2, %s23
      %p286 = scmp.lt.s32.totalorder %s22, 1
      %s287 = scalar_select %p286, %s22, 1
      %p288 = scmp.lt.s32.totalorder %s285, 1
      %s289 = scalar_select %p288, %s285, 1
      %s290 = smul.addr %s287, 2
      %s291 = sadd.s32 %s289, %s290
      %s292 = smul.addr %s291, 4
      %s293 = scalar_lea.vmem %s0, %s292
      %s294 = smul.u32 2, %s23
      %s295 = smul.u32 2, %s23
      %p296 = scmp.lt.s32.totalorder %s22, 1
      %s297 = scalar_select %p296, %s22, 1
      %p298 = scmp.lt.s32.totalorder %s295, 1
      %s299 = scalar_select %p298, %s295, 1
      %s300 = smul.addr %s297, 2
      %s301 = sadd.s32 %s299, %s300
      %s302 = smul.addr %s301, 4
      %s303 = scalar_lea.vmem %s5, %s302
      %s304 = smul.u32 2, %s23
      %s305 = smul.u32 2, %s23
      %p306 = scmp.lt.s32.totalorder %s22, 1
      %s307 = scalar_select %p306, %s22, 1
      %p308 = scmp.lt.s32.totalorder %s305, 1
      %s309 = scalar_select %p308, %s305, 1
      %s310 = smul.addr %s307, 4
      %s311 = sadd.s32 %s309, %s310
      %s312 = smul.addr %s311, 8
      %s313 = scalar_lea.vmem %s6, %s312
      %s314 = smul.u32 2, %s23
      %v315 = vld [vmem:[%s293] sm:$0xff]
      %v316 = vld [vmem:[%s1] sm:$0x7]
      %v317 = vld [vmem:[%s2] sm:$0x7]
      %319 = vset.pattern.permute.xlu0 0
      %320 = vperm.xlu0 %319, %v317
      %v321 = vpop.permute.xlu0 %320
      %v324 = vcombine.high %v315, %v315
      %vm325 = vcmask 31744
      %v327 = vsel %vm325, %v316, 0
      %vm329 = vcmask 1043456
      %v330 = vsel %vm329, %v315, 0
      %v332 = vsel %vm329, %v324, 0
      %334 = vmatprep.subr.mxu0 %v332
      %335 = vmatpush1.msra.mxu0 %v330
      %336 = vmatprep.subr.mxu0 0.0
      %337 = vmatpush1.msra.mxu0 0.0
      %338 = vmatprep.subr.mxu0 0.0
      %339 = vmatpush1.msra.mxu0 0.0
      %340 = vmatprep.subr.mxu0 0.0
      %341 = vmatpush1.msra.mxu0 0.0
      %342 = vmatprep.subr.mxu0 0.0
      %343 = vmatpush1.msra.mxu0 0.0
      %344 = vmatprep.subr.mxu0 0.0
      %345 = vmatpush1.msra.mxu0 0.0
      %346 = vmatprep.subr.mxu0 0.0
      %347 = vmatpush1.msra.mxu0 0.0
      %348 = vmatprep.subr.mxu0 0.0
      %349 = vmatpush1.msra.mxu0 0.0
      %350 = vmatprep.subr.mxu0 0.0
      %351 = vmatpush1.msra.mxu0 0.0
      %352 = vmatprep.subr.mxu0 0.0
      %353 = vmatpush1.msra.mxu0 0.0
      %354 = vmatprep.subr.mxu0 0.0
      %355 = vmatpush1.msra.mxu0 0.0
      %356 = vmatprep.subr.mxu0 0.0
      %357 = vmatpush1.msra.mxu0 0.0
      %358 = vmatprep.subr.mxu0 0.0
      %359 = vmatpush1.msra.mxu0 0.0
      %360 = vmatprep.subr.mxu0 0.0
      %361 = vmatpush1.msra.mxu0 0.0
      %362 = vmatprep.subr.mxu0 0.0
      %363 = vmatpush1.msra.mxu0 0.0
      %364 = vmatprep.subr.mxu0 0.0
      %365 = vmatpush1.msra.mxu0 0.0
      %366 = vmatprep.subr.mxu0 0.0
      %367 = vmatpush1.msra.mxu0 0.0
      %368 = vmatprep.subr.mxu0 0.0
      %369 = vmatpush1.msra.mxu0 0.0
      %370 = vmatprep.subr.mxu0 0.0
      %371 = vmatpush1.msra.mxu0 0.0
      %372 = vmatprep.subr.mxu0 0.0
      %373 = vmatpush1.msra.mxu0 0.0
      %374 = vmatprep.subr.mxu0 0.0
      %375 = vmatpush1.msra.mxu0 0.0
      %376 = vmatprep.subr.mxu0 0.0
      %377 = vmatpush1.msra.mxu0 0.0
      %378 = vmatprep.subr.mxu0 0.0
      %379 = vmatpush1.msra.mxu0 0.0
      %380 = vmatprep.subr.mxu0 0.0
      %381 = vmatpush1.msra.mxu0 0.0
      %382 = vmatprep.subr.mxu0 0.0
      %383 = vmatpush1.msra.mxu0 0.0
      %384 = vmatprep.subr.mxu0 0.0
      %385 = vmatpush1.msra.mxu0 0.0
      %386 = vmatprep.subr.mxu0 0.0
      %387 = vmatpush1.msra.mxu0 0.0
      %388 = vmatprep.subr.mxu0 0.0
      %389 = vmatpush1.msra.mxu0 0.0
      %390 = vmatprep.subr.mxu0 0.0
      %391 = vmatpush1.msra.mxu0 0.0
      %392 = vmatprep.subr.mxu0 0.0
      %393 = vmatpush1.msra.mxu0 0.0
      %394 = vmatprep.subr.mxu0 0.0
      %395 = vmatpush1.msra.mxu0 0.0
      %396 = vmatprep.subr.mxu0 0.0
      %397 = vmatpush1.msra.mxu0 0.0
      %398 = vmatprep.mubr.f32.mxu0 0.0
      %399 = vmatmul.mubr.f32.gmra.mrb[0].mxu0 %v327
      %v400 = vpop.f32.mrb[0].mxu0
      %v401 = vadd.f32 %v321, %v400
      %v402 = vpop.f32.mrb[0].mxu0
      %v403 = vadd.f32 %v321, %v402
      %404 = vdwg.mxu0
      %v405 = vld [vmem:[%s3] sm:$0xff]
      %v406 = vld [vmem:[%s3 + $0x8] sm:$0xf]
      %v407 = vld [vmem:[%s4] sm:$0xff]
      %v408 = vld [vmem:[%s4 + $0x8] sm:$0xf]
      %410 = vset.pattern.permute.xlu0 0
      %411 = vperm.xlu0 %410, %v407
      %v412 = vpop.permute.xlu0 %411
      %415 = vset.pattern.permute.xlu0 0
      %416 = vperm.xlu0 %415, %v408
      %v417 = vpop.permute.xlu0 %416
      %v420 = vsel %vm325, %v405, 0
      %v423 = vsel %vm325, %v406, 0
      %425 = vmatprep.subr.mxu0 %v332
      %426 = vmatpush1.msra.mxu0 %v330
      %427 = vmatprep.subr.mxu0 0.0
      %428 = vmatpush1.msra.mxu0 0.0
      %429 = vmatprep.subr.mxu0 0.0
      %430 = vmatpush1.msra.mxu0 0.0
      %431 = vmatprep.subr.mxu0 0.0
      %432 = vmatpush1.msra.mxu0 0.0
      %433 = vmatprep.subr.mxu0 0.0
      %434 = vmatpush1.msra.mxu0 0.0
      %435 = vmatprep.subr.mxu0 0.0
      %436 = vmatpush1.msra.mxu0 0.0
      %437 = vmatprep.subr.mxu0 0.0
      %438 = vmatpush1.msra.mxu0 0.0
      %439 = vmatprep.subr.mxu0 0.0
      %440 = vmatpush1.msra.mxu0 0.0
      %441 = vmatprep.subr.mxu0 0.0
      %442 = vmatpush1.msra.mxu0 0.0
      %443 = vmatprep.subr.mxu0 0.0
      %444 = vmatpush1.msra.mxu0 0.0
      %445 = vmatprep.subr.mxu0 0.0
      %446 = vmatpush1.msra.mxu0 0.0
      %447 = vmatprep.subr.mxu0 0.0
      %448 = vmatpush1.msra.mxu0 0.0
      %449 = vmatprep.subr.mxu0 0.0
      %450 = vmatpush1.msra.mxu0 0.0
      %451 = vmatprep.subr.mxu0 0.0
      %452 = vmatpush1.msra.mxu0 0.0
      %453 = vmatprep.subr.mxu0 0.0
      %454 = vmatpush1.msra.mxu0 0.0
      %455 = vmatprep.subr.mxu0 0.0
      %456 = vmatpush1.msra.mxu0 0.0
      %457 = vmatprep.subr.mxu0 0.0
      %458 = vmatpush1.msra.mxu0 0.0
      %459 = vmatprep.subr.mxu0 0.0
      %460 = vmatpush1.msra.mxu0 0.0
      %461 = vmatprep.subr.mxu0 0.0
      %462 = vmatpush1.msra.mxu0 0.0
      %463 = vmatprep.subr.mxu0 0.0
      %464 = vmatpush1.msra.mxu0 0.0
      %465 = vmatprep.subr.mxu0 0.0
      %466 = vmatpush1.msra.mxu0 0.0
      %467 = vmatprep.subr.mxu0 0.0
      %468 = vmatpush1.msra.mxu0 0.0
      %469 = vmatprep.subr.mxu0 0.0
      %470 = vmatpush1.msra.mxu0 0.0
      %471 = vmatprep.subr.mxu0 0.0
      %472 = vmatpush1.msra.mxu0 0.0
      %473 = vmatprep.subr.mxu0 0.0
      %474 = vmatpush1.msra.mxu0 0.0
      %475 = vmatprep.subr.mxu0 0.0
      %476 = vmatpush1.msra.mxu0 0.0
      %477 = vmatprep.subr.mxu0 0.0
      %478 = vmatpush1.msra.mxu0 0.0
      %479 = vmatprep.subr.mxu0 0.0
      %480 = vmatpush1.msra.mxu0 0.0
      %481 = vmatprep.subr.mxu0 0.0
      %482 = vmatpush1.msra.mxu0 0.0
      %483 = vmatprep.subr.mxu0 0.0
      %484 = vmatpush1.msra.mxu0 0.0
      %485 = vmatprep.subr.mxu0 0.0
      %486 = vmatpush1.msra.mxu0 0.0
      %487 = vmatprep.subr.mxu0 0.0
      %488 = vmatpush1.msra.mxu0 0.0
      %489 = vmatprep.mubr.f32.mxu0 0.0
      %490 = vmatmul.mubr.f32.gmra.mrb[0].mxu0 %v420
      %v491 = vpop.f32.mrb[0].mxu0
      %v492 = vadd.f32 %v412, %v491
      %v493 = vpop.f32.mrb[0].mxu0
      %v494 = vadd.f32 %v412, %v493
      %495 = vmatprep.mubr.f32.mxu0 0.0
      %496 = vmatmul.mubr.f32.gmra.mrb[0].mxu0 %v423
      %v497 = vpop.f32.mrb[0].mxu0
      %v498 = vadd.f32 %v417, %v497
      %v499 = vpop.f32.mrb[0].mxu0
      %v500 = vadd.f32 %v417, %v499
      %501 = vdwg.mxu0
      %v504 = vcombine.low %v401, %v403
      %506 = vst [vmem:[%s303] sm:$0x77] %v504
      %507 = vst [vmem:[%s313] sm:$0xff] %v492
      %508 = vst [vmem:[%s313 + $0x8] sm:$0xff] %v494
      %509 = vst [vmem:[%s313 + $0x10] sm:$0xf] %v498
      %510 = vst [vmem:[%s313 + $0x18] sm:$0xf] %v500
      %s511 = smul.u32 2, %s23
      %p512 = scmp.lt.s32.totalorder %s22, 1
      %s513 = scalar_select %p512, %s22, 1
      %p514 = scmp.lt.s32.totalorder %s511, 1
      %s515 = scalar_select %p514, %s511, 1
      %s516 = smul.addr %s513, 2
      %s517 = sadd.s32 %s515, %s516
      %s518 = smul.addr %s517, 4
      %s519 = scalar_lea.vmem %s5, %s518
      %s520 = smul.u32 2, %s23
      %p521 = scmp.lt.s32.totalorder %s22, 1
      %s522 = scalar_select %p521, %s22, 1
      %p523 = scmp.lt.s32.totalorder %s520, 1
      %s524 = scalar_select %p523, %s520, 1
      %s525 = smul.addr %s522, 4
      %s526 = sadd.s32 %s524, %s525
      %s527 = smul.addr %s526, 8
      %s528 = scalar_lea.vmem %s6, %s527
      // Predicated region
      $region41: #{_forward_all_levels.2} parent=39 // pred_check
        %p529 = pneg %p162
      $region42: #{_forward_all_levels.2} parent=39 // pred_check_branch
        %531 = sbr.rel (%p529) target = $region44
      $region43: #{_forward_all_levels.2} parent=39 // pred_region
        %s532 = smul.u32 2, %s23
      $region44: #{_forward_all_levels.2} parent=39 // pred_fallthru
        _
      // Predicated region
      $region45: #{_forward_all_levels.2} parent=39 // pred_check
        %p533 = pneg %p190
      $region46: #{_forward_all_levels.2} parent=39 // pred_check_branch
        %535 = sbr.rel (%p533) target = $region48
      $region47: #{_forward_all_levels.2} parent=39 // pred_region
        %s536 = smul.u32 2, %s23
      $region48: #{_forward_all_levels.2} parent=39 // pred_fallthru
        _
    $region40: #{_forward_all_levels.2} parent=5 // pred_fallthru
      _
    %p537 = scmp.le.s32.totalorder 2, %s13
    // Predicated region
    $region49: #{_forward_all_levels.2} parent=5 // pred_check
      %p538 = pneg %p537
    $region50: #{_forward_all_levels.2} parent=5 // pred_check_branch
      %540 = sbr.rel (%p538) target = $region52
    $region51: #{_forward_all_levels.2} parent=5 // pred_region
      %s541 = ssub.s32 %s13, 2
      // Predicated region
      $region53: #{_forward_all_levels.2} parent=51 // pred_check
        %p542 = pneg %p168
      $region54: #{_forward_all_levels.2} parent=51 // pred_check_branch
        %544 = sbr.rel (%p542) target = $region56
      $region55: #{_forward_all_levels.2} parent=51 // pred_region
        %s545 = smul.u32 2, %s25
        %p546 = scmp.lt.s32.totalorder %s24, 1
        %s547 = scalar_select %p546, %s24, 1
        %p548 = scmp.lt.s32.totalorder %s545, 1
        %s549 = scalar_select %p548, %s545, 1
        %s550 = smul.addr %s547, 2
        %s551 = sadd.s32 %s549, %s550
        %s552 = smul.addr %s551, 4
        %s553 = scalar_lea.vmem %s5, %s552
      $region56: #{_forward_all_levels.2} parent=51 // pred_fallthru
        _
      // Predicated region
      $region57: #{_forward_all_levels.2} parent=51 // pred_check
        %p554 = pneg %p196
      $region58: #{_forward_all_levels.2} parent=51 // pred_check_branch
        %556 = sbr.rel (%p554) target = $region60
      $region59: #{_forward_all_levels.2} parent=51 // pred_region
        %s557 = smul.u32 2, %s25
        %p558 = scmp.lt.s32.totalorder %s24, 1
        %s559 = scalar_select %p558, %s24, 1
        %p560 = scmp.lt.s32.totalorder %s557, 1
        %s561 = scalar_select %p560, %s557, 1
        %s562 = smul.addr %s559, 4
        %s563 = sadd.s32 %s561, %s562
        %s564 = smul.addr %s563, 8
        %s565 = scalar_lea.vmem %s6, %s564
      $region60: #{_forward_all_levels.2} parent=51 // pred_fallthru
        _
    $region52: #{_forward_all_levels.2} parent=5 // pred_fallthru
      _
  $region6: #{_forward_all_levels.2} parent=0 // loop_footer
    %s17 = sadd.s32 1, %s13
  $region7: #{_forward_all_levels.2} parent=0 // loop_footer_branch
    %12 = sbr.rel target = $region3
  $region8: #{_forward_all_levels.2} parent=0 // loop_exit
    _

// kernel: _forward_all_levels.3
$region0: #{_forward_all_levels.3}
  #allocation0 [shape = 'u32[]', space=smem, size = 0x4, offset = 0x4, fixed_abs, tag = 'smem constant byte address 0x4 - core index']
  #allocation1 [shape = 'u32[144,128]{1,0:T(1,128)}', space=vmem, size = 0x12000, scoped, tag = 'internal scratch']
  %s0 = inlined_call_operand.vmem [shape: f32[2,4,64], index: 0, kind: input, shape index: {}]
  %s1 = inlined_call_operand.vmem [shape: f32[3,4], index: 1, kind: input, shape index: {}]
  %s2 = inlined_call_operand.vmem [shape: f32[3,1], index: 2, kind: input, shape index: {}]
  %s3 = inlined_call_operand.vmem [shape: f32[12,4], index: 3, kind: input, shape index: {}]
  %s4 = inlined_call_operand.vmem [shape: f32[12,1], index: 4, kind: input, shape index: {}]
  %s5 = inlined_call_operand.vmem [shape: f32[2,3,64], index: 5, kind: output, shape index: {0}]
  %s6 = inlined_call_operand.vmem [shape: f32[2,12,64], index: 6, kind: output, shape index: {1}]
  %7 = xla_tuple %s5, %s6
  %s8 = sld [smem:[#allocation0]]
  $region61: #{_forward_all_levels.3} parent=0
    _
  %s10 = ssub.s32 1, %s8
  %s11 = scalar_select 0, %s10, %s8
  loop: start=0, step=1, limit=4
  $region2: #{_forward_all_levels.3} parent=0 // loop_pre_header
    _
  $region3: #{_forward_all_levels.3} parent=0 // loop_header
    %s13 = sphi 0, %s17
    %p14 = scmp.ge.s32.totalorder %s13, 4
    %s20 = sphi 0, %s32
    %s21 = sphi 0, %s28
    %s22 = sphi 0, %s20
    %s23 = sphi 0, %s21
    %s24 = sphi 0, %s22
    %s25 = sphi 0, %s23
    %s37 = sphi 0, %s39
    %s40 = sphi 0, %s37
    %s41 = sphi 0, %s40
    %s57 = sphi 0, %s41
    %s61 = sphi 0, %s61
    %s63 = sphi 0, %s61
    %s64 = sphi 0, %s63
    %s78 = sphi 0, %s64
    %s82 = sphi 0, %s82
    %s84 = sphi 0, %s82
    %s85 = sphi 0, %s84
    %s99 = sphi 0, %s85
    %s103 = sphi 0, %s103
    %s105 = sphi 0, %s103
    %s106 = sphi 0, %s105
    %s120 = sphi 0, %s106
    %s124 = sphi 0, %s124
    %s126 = sphi 0, %s124
    %s127 = sphi 0, %s126
    %s141 = sphi 0, %s127
    %s149 = sphi 0, %s151
    %s152 = sphi 0, %s149
    %s153 = sphi 0, %s152
    %s169 = sphi 0, %s153
    %s177 = sphi 0, %s179
    %s180 = sphi 0, %s177
    %s181 = sphi 0, %s180
    %s197 = sphi 0, %s181
  $region4: #{_forward_all_levels.3} parent=0 // loop_header_branch
    %16 = sbr.rel (%p14) target = $region8
  $region5: #{_forward_all_levels.3} parent=0 // loop_body
    %s18 = ssub.s32 %s13, 1
    %s19 = ssub.s32 %s13, 2
    %s26 = sadd.s32 1, %s21
    %p27 = scmp.ge.s32.totalorder %s26, 1
    %s28 = scalar_select %p27, 0, %s26
    %s29 = sadd.s32 1, %s20
    %s30 = scalar_select %p27, %s29, %s20
    %p31 = scmp.ge.s32.totalorder %s30, 2
    %s32 = scalar_select %p31, 0, %s30
    %s33 = ssub.s32 %s20, %s32
    %s34 = ssub.s32 %s21, %s28
    %s35 = sor.u32 %s33, %s34
    %p36 = scmp.eq.s32.totalorder %s35, 0
    %s38 = sadd.s32 %s37, 1
    %s39 = scalar_select %p36, %s37, %s38
    %p42 = pneg %p36
    %p43 = scmp.eq.s32.totalorder %s13, 1
    %p44 = por %p42, %p43
    %p45 = scmp.ne.s32.totalorder %s37, %s40
    %p46 = scmp.eq.s32.totalorder %s13, 0
    %p47 = por %p45, %p46
    %p48 = scmp.ne.s32.totalorder %s37, %s40
    %p49 = scmp.eq.s32.totalorder %s18, 1
    %p50 = por %p48, %p49
    %p51 = scmp.ne.s32.totalorder %s40, %s41
    %p52 = scmp.eq.s32.totalorder %s18, 0
    %p53 = por %p51, %p52
    %p54 = scmp.ne.s32.totalorder %s40, %s41
    %p55 = scmp.eq.s32.totalorder %s19, 1
    %p56 = por %p54, %p55
    %p58 = scmp.ne.s32.totalorder %s41, %s57
    %p59 = scmp.eq.s32.totalorder %s19, 0
    %p60 = por %p58, %p59
    %s62 = sadd.s32 %s61, 1
    %p65 = scmp.eq.s32.totalorder %s13, 1
    %p66 = scmp.ne.s32.totalorder %s61, %s63
    %p67 = scmp.eq.s32.totalorder %s13, 0
    %p68 = por %p66, %p67
    %p69 = scmp.ne.s32.totalorder %s61, %s63
    %p70 = scmp.eq.s32.totalorder %s18, 1
    %p71 = por %p69, %p70
    %p72 = scmp.ne.s32.totalorder %s63, %s64
    %p73 = scmp.eq.s32.totalorder %s18, 0
    %p74 = por %p72, %p73
    %p75 = scmp.ne.s32.totalorder %s63, %s64
    %p76 = scmp.eq.s32.totalorder %s19, 1
    %p77 = por %p75, %p76
    %p79 = scmp.ne.s32.totalorder %s64, %s78
    %p80 = scmp.eq.s32.totalorder %s19, 0
    %p81 = por %p79, %p80
    %s83 = sadd.s32 %s82, 1
    %p86 = scmp.eq.s32.totalorder %s13, 1
    %p87 = scmp.ne.s32.totalorder %s82, %s84
    %p88 = scmp.eq.s32.totalorder %s13, 0
    %p89 = por %p87, %p88
    %p90 = scmp.ne.s32.totalorder %s82, %s84
    %p91 = scmp.eq.s32.totalorder %s18, 1
    %p92 = por %p90, %p91
    %p93 = scmp.ne.s32.totalorder %s84, %s85
    %p94 = scmp.eq.s32.totalorder %s18, 0
    %p95 = por %p93, %p94
    %p96 = scmp.ne.s32.totalorder %s84, %s85
    %p97 = scmp.eq.s32.totalorder %s19, 1
    %p98 = por %p96, %p97
    %p100 = scmp.ne.s32.totalorder %s85, %s99
    %p101 = scmp.eq.s32.totalorder %s19, 0
    %p102 = por %p100, %p101
    %s104 = sadd.s32 %s103, 1
    %p107 = scmp.eq.s32.totalorder %s13, 1
    %p108 = scmp.ne.s32.totalorder %s103, %s105
    %p109 = scmp.eq.s32.totalorder %s13, 0
    %p110 = por %p108, %p109
    %p111 = scmp.ne.s32.totalorder %s103, %s105
    %p112 = scmp.eq.s32.totalorder %s18, 1
    %p113 = por %p111, %p112
    %p114 = scmp.ne.s32.totalorder %s105, %s106
    %p115 = scmp.eq.s32.totalorder %s18, 0
    %p116 = por %p114, %p115
    %p117 = scmp.ne.s32.totalorder %s105, %s106
    %p118 = scmp.eq.s32.totalorder %s19, 1
    %p119 = por %p117, %p118
    %p121 = scmp.ne.s32.totalorder %s106, %s120
    %p122 = scmp.eq.s32.totalorder %s19, 0
    %p123 = por %p121, %p122
    %s125 = sadd.s32 %s124, 1
    %p128 = scmp.eq.s32.totalorder %s13, 1
    %p129 = scmp.ne.s32.totalorder %s124, %s126
    %p130 = scmp.eq.s32.totalorder %s13, 0
    %p131 = por %p129, %p130
    %p132 = scmp.ne.s32.totalorder %s124, %s126
    %p133 = scmp.eq.s32.totalorder %s18, 1
    %p134 = por %p132, %p133
    %p135 = scmp.ne.s32.totalorder %s126, %s127
    %p136 = scmp.eq.s32.totalorder %s18, 0
    %p137 = por %p135, %p136
    %p138 = scmp.ne.s32.totalorder %s126, %s127
    %p139 = scmp.eq.s32.totalorder %s19, 1
    %p140 = por %p138, %p139
    %p142 = scmp.ne.s32.totalorder %s127, %s141
    %p143 = scmp.eq.s32.totalorder %s19, 0
    %p144 = por %p142, %p143
    %s145 = ssub.s32 %s20, %s32
    %s146 = ssub.s32 %s21, %s28
    %s147 = sor.u32 %s145, %s146
    %p148 = scmp.eq.s32.totalorder %s147, 0
    %s150 = sadd.s32 %s149, 1
    %s151 = scalar_select %p148, %s149, %s150
    %p154 = pneg %p148
    %p155 = scmp.eq.s32.totalorder %s13, 1
    %p156 = por %p154, %p155
    %p157 = scmp.ne.s32.totalorder %s149, %s152
    %p158 = scmp.eq.s32.totalorder %s13, 0
    %p159 = por %p157, %p158
    %p160 = scmp.ne.s32.totalorder %s149, %s152
    %p161 = scmp.eq.s32.totalorder %s18, 1
    %p162 = por %p160, %p161
    %p163 = scmp.ne.s32.totalorder %s152, %s153
    %p164 = scmp.eq.s32.totalorder %s18, 0
    %p165 = por %p163, %p164
    %p166 = scmp.ne.s32.totalorder %s152, %s153
    %p167 = scmp.eq.s32.totalorder %s19, 1
    %p168 = por %p166, %p167
    %p170 = scmp.ne.s32.totalorder %s153, %s169
    %p171 = scmp.eq.s32.totalorder %s19, 0
    %p172 = por %p170, %p171
    %s173 = ssub.s32 %s20, %s32
    %s174 = ssub.s32 %s21, %s28
    %s175 = sor.u32 %s173, %s174
    %p176 = scmp.eq.s32.totalorder %s175, 0
    %s178 = sadd.s32 %s177, 1
    %s179 = scalar_select %p176, %s177, %s178
    %p182 = pneg %p176
    %p183 = scmp.eq.s32.totalorder %s13, 1
    %p184 = por %p182, %p183
    %p185 = scmp.ne.s32.totalorder %s177, %s180
    %p186 = scmp.eq.s32.totalorder %s13, 0
    %p187 = por %p185, %p186
    %p188 = scmp.ne.s32.totalorder %s177, %s180
    %p189 = scmp.eq.s32.totalorder %s18, 1
    %p190 = por %p188, %p189
    %p191 = scmp.ne.s32.totalorder %s180, %s181
    %p192 = scmp.eq.s32.totalorder %s18, 0
    %p193 = por %p191, %p192
    %p194 = scmp.ne.s32.totalorder %s180, %s181
    %p195 = scmp.eq.s32.totalorder %s19, 1
    %p196 = por %p194, %p195
    %p198 = scmp.ne.s32.totalorder %s181, %s197
    %p199 = scmp.eq.s32.totalorder %s19, 0
    %p200 = por %p198, %p199
    %p201 = scmp.le.s32.totalorder 1, %s13
    %p202 = scmp.lt.s32.totalorder %s13, 3
    %p203 = pnand %p201, %p202
    %p204 = pneg %p203
    // Predicated region
    $region9: #{_forward_all_levels.3} parent=5 // pred_check
      _
    $region10: #{_forward_all_levels.3} parent=5 // pred_check_branch
      %206 = sbr.rel (%p203) target = $region12
    $region11: #{_forward_all_levels.3} parent=5 // pred_region
      %s207 = ssub.s32 %s13, 1
      // Predicated region
      $region13: #{_forward_all_levels.3} parent=11 // pred_check
        %p208 = pneg %p74
      $region14: #{_forward_all_levels.3} parent=11 // pred_check_branch
        %210 = sbr.rel (%p208) target = $region16
      $region15: #{_forward_all_levels.3} parent=11 // pred_region
        _
      $region16: #{_forward_all_levels.3} parent=11 // pred_fallthru
        _
      // Predicated region
      $region17: #{_forward_all_levels.3} parent=11 // pred_check
        %p211 = pneg %p95
      $region18: #{_forward_all_levels.3} parent=11 // pred_check_branch
        %213 = sbr.rel (%p211) target = $region20
      $region19: #{_forward_all_levels.3} parent=11 // pred_region
        _
      $region20: #{_forward_all_levels.3} parent=11 // pred_fallthru
        _
      // Predicated region
      $region21: #{_forward_all_levels.3} parent=11 // pred_check
        %p214 = pneg %p116
      $region22: #{_forward_all_levels.3} parent=11 // pred_check_branch
        %216 = sbr.rel (%p214) target = $region24
      $region23: #{_forward_all_levels.3} parent=11 // pred_region
        _
      $region24: #{_forward_all_levels.3} parent=11 // pred_fallthru
        _
      // Predicated region
      $region25: #{_forward_all_levels.3} parent=11 // pred_check
        %p217 = pneg %p137
      $region26: #{_forward_all_levels.3} parent=11 // pred_check_branch
        %219 = sbr.rel (%p217) target = $region28
      $region27: #{_forward_all_levels.3} parent=11 // pred_region
        _
      $region28: #{_forward_all_levels.3} parent=11 // pred_fallthru
        _
    $region12: #{_forward_all_levels.3} parent=5 // pred_fallthru
      _
    %p220 = scmp.lt.s32.totalorder %s13, 2
    // Predicated region
    $region29: #{_forward_all_levels.3} parent=5 // pred_check
      %p221 = pneg %p220
    $region30: #{_forward_all_levels.3} parent=5 // pred_check_branch
      %223 = sbr.rel (%p221) target = $region32
    $region31: #{_forward_all_levels.3} parent=5 // pred_region
      // Predicated region
      $region33: #{_forward_all_levels.3} parent=31 // pred_check
        %p224 = pneg %p47
      $region34: #{_forward_all_levels.3} parent=31 // pred_check_branch
        %226 = sbr.rel (%p224) target = $region36
      $region35: #{_forward_all_levels.3} parent=31 // pred_region
        %p227 = scmp.lt.s32.totalorder %s20, 1
        %s228 = scalar_select %p227, %s20, 1
        %p229 = scmp.lt.s32.totalorder %s21, 0
        %s230 = scalar_select %p229, %s21, 0
        %s231 = sadd.s32 %s230, %s228
        %s232 = smul.addr %s231, 4
        %s233 = scalar_lea.vmem %s0, %s232
      $region36: #{_forward_all_levels.3} parent=31 // pred_fallthru
        _
    $region32: #{_forward_all_levels.3} parent=5 // pred_fallthru
      _
    %p234 = scmp.le.s32.totalorder 1, %s13
    %p235 = scmp.lt.s32.totalorder %s13, 3
    %p236 = pnand %p234, %p235
    %p237 = pneg %p236
    // Predicated region
    $region37: #{_forward_all_levels.3} parent=5 // pred_check
      _
    $region38: #{_forward_all_levels.3} parent=5 // pred_check_branch
      %239 = sbr.rel (%p236) target = $region40
    $region39: #{_forward_all_levels.3} parent=5 // pred_region
      %s240 = ssub.s32 %s13, 1
      %p241 = scmp.lt.s32.totalorder %s22, 1
      %s242 = scalar_select %p241, %s22, 1
      %p243 = scmp.lt.s32.totalorder %s23, 0
      %s244 = scalar_select %p243, %s23, 0
      %s245 = sadd.s32 %s244, %s242
      %s246 = smul.addr %s245, 4
      %s247 = scalar_lea.vmem %s0, %s246
      %p248 = pneg %p53
      %p249 = pneg %p50
      %p250 = pneg %p74
      %p251 = pneg %p71
      %p252 = pneg %p95
      %p253 = pneg %p92
      %p254 = pneg %p116
      %p255 = pneg %p113
      %p256 = pneg %p137
      %p257 = pneg %p134
      %p258 = pneg %p165
      %p259 = pneg %p162
      %p260 = scmp.lt.s32.totalorder %s22, 1
      %s261 = scalar_select %p260, %s22, 1
      %p262 = scmp.lt.s32.totalorder %s23, 0
      %s263 = scalar_select %p262, %s23, 0
      %s264 = sadd.s32 %s263, %s261
      %s265 = smul.addr %s264, 4
      %s266 = scalar_lea.vmem %s5, %s265
      %p267 = pneg %p193
      %p268 = pneg %p190
      %p269 = scmp.lt.s32.totalorder %s22, 1
      %s270 = scalar_select %p269, %s22, 1
      %p271 = scmp.lt.s32.totalorder %s23, 0
      %s272 = scalar_select %p271, %s23, 0
      %s273 = smul.addr %s270, 2
      %s274 = sadd.s32 %s272, %s273
      %s275 = smul.addr %s274, 8
      %s276 = scalar_lea.vmem %s6, %s275
      %p277 = scmp.lt.s32.totalorder %s22, 1
      %s278 = scalar_select %p277, %s22, 1
      %p279 = scmp.lt.s32.totalorder %s23, 0
      %s280 = scalar_select %p279, %s23, 0
      %s281 = sadd.s32 %s280, %s278
      %s282 = smul.addr %s281, 4
      %s283 = scalar_lea.vmem %s0, %s282
      %p284 = scmp.lt.s32.totalorder %s22, 1
      %s285 = scalar_select %p284, %s22, 1
      %p286 = scmp.lt.s32.totalorder %s23, 0
      %s287 = scalar_select %p286, %s23, 0
      %s288 = sadd.s32 %s287, %s285
      %s289 = smul.addr %s288, 4
      %s290 = scalar_lea.vmem %s5, %s289
      %p291 = scmp.lt.s32.totalorder %s22, 1
      %s292 = scalar_select %p291, %s22, 1
      %p293 = scmp.lt.s32.totalorder %s23, 0
      %s294 = scalar_select %p293, %s23, 0
      %s295 = smul.addr %s292, 2
      %s296 = sadd.s32 %s294, %s295
      %s297 = smul.addr %s296, 8
      %s298 = scalar_lea.vmem %s6, %s297
      %v299 = vld [vmem:[%s283] sm:$0xf]
      %v300 = vld [vmem:[%s1] sm:$0x7]
      %v301 = vld [vmem:[%s2] sm:$0x7]
      %303 = vset.pattern.permute.xlu0 0
      %304 = vperm.xlu0 %303, %v301
      %v305 = vpop.permute.xlu0 %304
      %vm307 = vcmask 31744
      %v309 = vsel %vm307, %v300, 0
      %vm311 = vcmask 1043456
      %v313 = vsel %vm311, %v299, 0
      %315 = vmatprep.subr.mxu0 0.0
      %316 = vmatpush1.msra.mxu0 %v313
      %317 = vmatprep.subr.mxu0 0.0
      %318 = vmatpush1.msra.mxu0 0.0
      %319 = vmatprep.subr.mxu0 0.0
      %320 = vmatpush1.msra.mxu0 0.0
      %321 = vmatprep.subr.mxu0 0.0
      %322 = vmatpush1.msra.mxu0 0.0
      %323 = vmatprep.subr.mxu0 0.0
      %324 = vmatpush1.msra.mxu0 0.0
      %325 = vmatprep.subr.mxu0 0.0
      %326 = vmatpush1.msra.mxu0 0.0
      %327 = vmatprep.subr.mxu0 0.0
      %328 = vmatpush1.msra.mxu0 0.0
      %329 = vmatprep.subr.mxu0 0.0
      %330 = vmatpush1.msra.mxu0 0.0
      %331 = vmatprep.subr.mxu0 0.0
      %332 = vmatpush1.msra.mxu0 0.0
      %333 = vmatprep.subr.mxu0 0.0
      %334 = vmatpush1.msra.mxu0 0.0
      %335 = vmatprep.subr.mxu0 0.0
      %336 = vmatpush1.msra.mxu0 0.0
      %337 = vmatprep.subr.mxu0 0.0
      %338 = vmatpush1.msra.mxu0 0.0
      %339 = vmatprep.subr.mxu0 0.0
      %340 = vmatpush1.msra.mxu0 0.0
      %341 = vmatprep.subr.mxu0 0.0
      %342 = vmatpush1.msra.mxu0 0.0
      %343 = vmatprep.subr.mxu0 0.0
      %344 = vmatpush1.msra.mxu0 0.0
      %345 = vmatprep.subr.mxu0 0.0
      %346 = vmatpush1.msra.mxu0 0.0
      %347 = vmatprep.subr.mxu0 0.0
      %348 = vmatpush1.msra.mxu0 0.0
      %349 = vmatprep.subr.mxu0 0.0
      %350 = vmatpush1.msra.mxu0 0.0
      %351 = vmatprep.subr.mxu0 0.0
      %352 = vmatpush1.msra.mxu0 0.0
      %353 = vmatprep.subr.mxu0 0.0
      %354 = vmatpush1.msra.mxu0 0.0
      %355 = vmatprep.subr.mxu0 0.0
      %356 = vmatpush1.msra.mxu0 0.0
      %357 = vmatprep.subr.mxu0 0.0
      %358 = vmatpush1.msra.mxu0 0.0
      %359 = vmatprep.subr.mxu0 0.0
      %360 = vmatpush1.msra.mxu0 0.0
      %361 = vmatprep.subr.mxu0 0.0
      %362 = vmatpush1.msra.mxu0 0.0
      %363 = vmatprep.subr.mxu0 0.0
      %364 = vmatpush1.msra.mxu0 0.0
      %365 = vmatprep.subr.mxu0 0.0
      %366 = vmatpush1.msra.mxu0 0.0
      %367 = vmatprep.subr.mxu0 0.0
      %368 = vmatpush1.msra.mxu0 0.0
      %369 = vmatprep.subr.mxu0 0.0
      %370 = vmatpush1.msra.mxu0 0.0
      %371 = vmatprep.subr.mxu0 0.0
      %372 = vmatpush1.msra.mxu0 0.0
      %373 = vmatprep.subr.mxu0 0.0
      %374 = vmatpush1.msra.mxu0 0.0
      %375 = vmatprep.subr.mxu0 0.0
      %376 = vmatpush1.msra.mxu0 0.0
      %377 = vmatprep.subr.mxu0 0.0
      %378 = vmatpush1.msra.mxu0 0.0
      %379 = vmatprep.mubr.f32.mxu0 0.0
      %380 = vmatmul.mubr.f32.gmra.mrb[0].mxu0 %v309
      %v381 = vpop.f32.mrb[0].mxu0
      %v382 = vadd.f32 %v305, %v381
      %v383 = vpop.f32.mrb[0].mxu0
      %384 = vdwg.mxu0
      %v385 = vld [vmem:[%s3] sm:$0xff]
      %v386 = vld [vmem:[%s3 + $0x8] sm:$0xf]
      %v387 = vld [vmem:[%s4] sm:$0xff]
      %v388 = vld [vmem:[%s4 + $0x8] sm:$0xf]
      %390 = vset.pattern.permute.xlu0 0
      %391 = vperm.xlu0 %390, %v387
      %v392 = vpop.permute.xlu0 %391
      %395 = vset.pattern.permute.xlu0 0
      %396 = vperm.xlu0 %395, %v388
      %v397 = vpop.permute.xlu0 %396
      %v400 = vsel %vm307, %v385, 0
      %v403 = vsel %vm307, %v386, 0
      %405 = vmatprep.subr.mxu0 0.0
      %406 = vmatpush1.msra.mxu0 %v313
      %407 = vmatprep.subr.mxu0 0.0
      %408 = vmatpush1.msra.mxu0 0.0
      %409 = vmatprep.subr.mxu0 0.0
      %410 = vmatpush1.msra.mxu0 0.0
      %411 = vmatprep.subr.mxu0 0.0
      %412 = vmatpush1.msra.mxu0 0.0
      %413 = vmatprep.subr.mxu0 0.0
      %414 = vmatpush1.msra.mxu0 0.0
      %415 = vmatprep.subr.mxu0 0.0
      %416 = vmatpush1.msra.mxu0 0.0
      %417 = vmatprep.subr.mxu0 0.0
      %418 = vmatpush1.msra.mxu0 0.0
      %419 = vmatprep.subr.mxu0 0.0
      %420 = vmatpush1.msra.mxu0 0.0
      %421 = vmatprep.subr.mxu0 0.0
      %422 = vmatpush1.msra.mxu0 0.0
      %423 = vmatprep.subr.mxu0 0.0
      %424 = vmatpush1.msra.mxu0 0.0
      %425 = vmatprep.subr.mxu0 0.0
      %426 = vmatpush1.msra.mxu0 0.0
      %427 = vmatprep.subr.mxu0 0.0
      %428 = vmatpush1.msra.mxu0 0.0
      %429 = vmatprep.subr.mxu0 0.0
      %430 = vmatpush1.msra.mxu0 0.0
      %431 = vmatprep.subr.mxu0 0.0
      %432 = vmatpush1.msra.mxu0 0.0
      %433 = vmatprep.subr.mxu0 0.0
      %434 = vmatpush1.msra.mxu0 0.0
      %435 = vmatprep.subr.mxu0 0.0
      %436 = vmatpush1.msra.mxu0 0.0
      %437 = vmatprep.subr.mxu0 0.0
      %438 = vmatpush1.msra.mxu0 0.0
      %439 = vmatprep.subr.mxu0 0.0
      %440 = vmatpush1.msra.mxu0 0.0
      %441 = vmatprep.subr.mxu0 0.0
      %442 = vmatpush1.msra.mxu0 0.0
      %443 = vmatprep.subr.mxu0 0.0
      %444 = vmatpush1.msra.mxu0 0.0
      %445 = vmatprep.subr.mxu0 0.0
      %446 = vmatpush1.msra.mxu0 0.0
      %447 = vmatprep.subr.mxu0 0.0
      %448 = vmatpush1.msra.mxu0 0.0
      %449 = vmatprep.subr.mxu0 0.0
      %450 = vmatpush1.msra.mxu0 0.0
      %451 = vmatprep.subr.mxu0 0.0
      %452 = vmatpush1.msra.mxu0 0.0
      %453 = vmatprep.subr.mxu0 0.0
      %454 = vmatpush1.msra.mxu0 0.0
      %455 = vmatprep.subr.mxu0 0.0
      %456 = vmatpush1.msra.mxu0 0.0
      %457 = vmatprep.subr.mxu0 0.0
      %458 = vmatpush1.msra.mxu0 0.0
      %459 = vmatprep.subr.mxu0 0.0
      %460 = vmatpush1.msra.mxu0 0.0
      %461 = vmatprep.subr.mxu0 0.0
      %462 = vmatpush1.msra.mxu0 0.0
      %463 = vmatprep.subr.mxu0 0.0
      %464 = vmatpush1.msra.mxu0 0.0
      %465 = vmatprep.subr.mxu0 0.0
      %466 = vmatpush1.msra.mxu0 0.0
      %467 = vmatprep.subr.mxu0 0.0
      %468 = vmatpush1.msra.mxu0 0.0
      %469 = vmatprep.mubr.f32.mxu0 0.0
      %470 = vmatmul.mubr.f32.gmra.mrb[0].mxu0 %v400
      %v471 = vpop.f32.mrb[0].mxu0
      %v472 = vadd.f32 %v392, %v471
      %v473 = vpop.f32.mrb[0].mxu0
      %474 = vmatprep.mubr.f32.mxu0 0.0
      %475 = vmatmul.mubr.f32.gmra.mrb[0].mxu0 %v403
      %v476 = vpop.f32.mrb[0].mxu0
      %v477 = vadd.f32 %v397, %v476
      %v478 = vpop.f32.mrb[0].mxu0
      %479 = vdwg.mxu0
      %vm480 = vcmask 518144
      %481 = vst.msk [vmem:[%s290] sm:$0x7] %vm480, %v382
      %vm482 = vcmask 523264
      %483 = vst.msk [vmem:[%s298] sm:$0xff] %vm482, %v472
      %vm484 = vcmask 519168
      %485 = vst.msk [vmem:[%s298 + $0x8] sm:$0xf] %vm484, %v477
      %p486 = scmp.lt.s32.totalorder %s22, 1
      %s487 = scalar_select %p486, %s22, 1
      %p488 = scmp.lt.s32.totalorder %s23, 0
      %s489 = scalar_select %p488, %s23, 0
      %s490 = sadd.s32 %s489, %s487
      %s491 = smul.addr %s490, 4
      %s492 = scalar_lea.vmem %s5, %s491
      %p493 = scmp.lt.s32.totalorder %s22, 1
      %s494 = scalar_select %p493, %s22, 1
      %p495 = scmp.lt.s32.totalorder %s23, 0
      %s496 = scalar_select %p495, %s23, 0
      %s497 = smul.addr %s494, 2
      %s498 = sadd.s32 %s496, %s497
      %s499 = smul.addr %s498, 8
      %s500 = scalar_lea.vmem %s6, %s499
      // Predicated region
      $region41: #{_forward_all_levels.3} parent=39 // pred_check
        %p501 = pneg %p162
      $region42: #{_forward_all_levels.3} parent=39 // pred_check_branch
        %503 = sbr.rel (%p501) target = $region44
      $region43: #{_forward_all_levels.3} parent=39 // pred_region
        _
      $region44: #{_forward_all_levels.3} parent=39 // pred_fallthru
        _
      // Predicated region
      $region45: #{_forward_all_levels.3} parent=39 // pred_check
        %p504 = pneg %p190
      $region46: #{_forward_all_levels.3} parent=39 // pred_check_branch
        %506 = sbr.rel (%p504) target = $region48
      $region47: #{_forward_all_levels.3} parent=39 // pred_region
        _
      $region48: #{_forward_all_levels.3} parent=39 // pred_fallthru
        _
    $region40: #{_forward_all_levels.3} parent=5 // pred_fallthru
      _
    %p507 = scmp.le.s32.totalorder 2, %s13
    // Predicated region
    $region49: #{_forward_all_levels.3} parent=5 // pred_check
      %p508 = pneg %p507
    $region50: #{_forward_all_levels.3} parent=5 // pred_check_branch
      %510 = sbr.rel (%p508) target = $region52
    $region51: #{_forward_all_levels.3} parent=5 // pred_region
      %s511 = ssub.s32 %s13, 2
      // Predicated region
      $region53: #{_forward_all_levels.3} parent=51 // pred_check
        %p512 = pneg %p168
      $region54: #{_forward_all_levels.3} parent=51 // pred_check_branch
        %514 = sbr.rel (%p512) target = $region56
      $region55: #{_forward_all_levels.3} parent=51 // pred_region
        %p515 = scmp.lt.s32.totalorder %s24, 1
        %s516 = scalar_select %p515, %s24, 1
        %p517 = scmp.lt.s32.totalorder %s25, 0
        %s518 = scalar_select %p517, %s25, 0
        %s519 = sadd.s32 %s518, %s516
        %s520 = smul.addr %s519, 4
        %s521 = scalar_lea.vmem %s5, %s520
      $region56: #{_forward_all_levels.3} parent=51 // pred_fallthru
        _
      // Predicated region
      $region57: #{_forward_all_levels.3} parent=51 // pred_check
        %p522 = pneg %p196
      $region58: #{_forward_all_levels.3} parent=51 // pred_check_branch
        %524 = sbr.rel (%p522) target = $region60
      $region59: #{_forward_all_levels.3} parent=51 // pred_region
        %p525 = scmp.lt.s32.totalorder %s24, 1
        %s526 = scalar_select %p525, %s24, 1
        %p527 = scmp.lt.s32.totalorder %s25, 0
        %s528 = scalar_select %p527, %s25, 0
        %s529 = smul.addr %s526, 2
        %s530 = sadd.s32 %s528, %s529
        %s531 = smul.addr %s530, 8
        %s532 = scalar_lea.vmem %s6, %s531
      $region60: #{_forward_all_levels.3} parent=51 // pred_fallthru
        _
    $region52: #{_forward_all_levels.3} parent=5 // pred_fallthru
      _
  $region6: #{_forward_all_levels.3} parent=0 // loop_footer
    %s17 = sadd.s32 1, %s13
  $region7: #{_forward_all_levels.3} parent=0 // loop_footer_branch
    %12 = sbr.rel target = $region3
  $region8: #{_forward_all_levels.3} parent=0 // loop_exit
    _

</llo_original>
